<compile_context>
chip_gen: v6e
topology: v6e:2x2x1
jax: 0.10.0
libtpu: 0.0.40
codegen_flags: <defaults>
</compile_context>

<pallas_src>
import math
from functools import partial

import jax
import jax.numpy as jnp
import numpy as np
from jax import lax
from jax.experimental import pallas as pl
from jax.experimental.pallas import tpu as pltpu


# ----------------------------------------------------------------------------
# Legendre delay state-space + ZOH discretization (numpy, parameter setup only)
# ----------------------------------------------------------------------------
def legendre_delay(theta, order):
    """Continuous-time (A, B) of the Legendre delay network (nengolib LegendreDelay)."""
    Q = np.arange(order, dtype=np.float64)
    R = (2.0 * Q + 1.0)[:, None] / theta
    j, i = np.meshgrid(Q, Q)
    A = np.where(i < j, -1.0, (-1.0) ** (i - j + 1)) * R
    B = ((-1.0) ** Q[:, None]) * R
    return A, B


def _expm_f64(M):
    """float64 scaling-and-squaring matrix exponential (no scipy dependency)."""
    M = np.asarray(M, dtype=np.float64)
    n = M.shape[0]
    nrm = np.linalg.norm(M, ord=1)
    s = max(0, int(np.ceil(np.log2(max(nrm, 1e-30)))) + 1)
    A = M / (2.0 ** s)
    E = np.eye(n)
    term = np.eye(n)
    for k in range(1, 25):
        term = term @ A / k
        E = E + term
    for _ in range(s):
        E = E @ E
    return E


def cont2discrete_zoh(A, B, dt=1.0):
    """ZOH discretization via the augmented-matrix exponential (scipy cont2discrete)."""
    n = A.shape[0]
    M = np.zeros((n + 1, n + 1), dtype=np.float64)
    M[:n, :n] = A * dt
    M[:n, n:] = B * dt
    Md = _expm_f64(M)
    return Md[:n, :n], Md[:n, n:]


# ----------------------------------------------------------------------------
# Deterministic parameter construction (mirrors the PyTorch __init__)
# ----------------------------------------------------------------------------
def make_params(key, input_size, hidden_size, order, theta=100.0):
    Ac, Bc = legendre_delay(theta, order)
    Ad, Bd = cont2discrete_zoh(Ac, Bc, dt=1.0)
    A_param = (Ad - np.eye(order)).astype(np.float32)   # AT parameter
    B_param = Bd.astype(np.float32)                     # BT parameter (order, 1)

    k = jax.random.split(key, 5)

    def lecun_uniform(k, shape):
        fan_in = shape[1]
        bound = math.sqrt(3.0 / fan_in)
        return jax.random.uniform(k, shape, jnp.float32, -bound, bound)

    def xavier_normal(k, shape):
        fan_out, fan_in = shape
        std = math.sqrt(2.0 / (fan_in + fan_out))
        return std * jax.random.normal(k, shape, jnp.float32)

    enc_x = lecun_uniform(k[0], (1, input_size))
    enc_h = lecun_uniform(k[1], (1, hidden_size))
    enc_m = jnp.zeros((1, order), jnp.float32)           # constant_(0) initializer
    Wx = xavier_normal(k[2], (hidden_size, input_size))
    Wh = xavier_normal(k[3], (hidden_size, hidden_size))
    Wm = xavier_normal(k[4], (hidden_size, order))
    return (enc_x, enc_h, enc_m, Wx, Wh, Wm,
            jnp.asarray(A_param), jnp.asarray(B_param))


# ----------------------------------------------------------------------------
# One-time weight fusion (hoisted out of the per-call path; done in float64)
# ----------------------------------------------------------------------------
def _round_up(x, m):
    return ((x + m - 1) // m) * m


def prepare_fused_params(params):
    """Fold the whole cell into two lane-dense weights (f64 math, f32 result).

    With z = [x | h | m] (B, K) the cell is exactly:
        u      = z @ E.T
        m_new  = z @ Wm_comb,        Wm_comb = E.T @ BT.T + [0; 0; I_N + AT.T]
        h_new  = tanh(z @ Wh_comb),  Wh_comb = [Wx.T; Wh.T; 0] + Wm_comb @ Wm.T
    Both outputs are packed into one (K, P) weight (cols [0:H] -> h_pre,
    [H:H+N] -> m_new, rest zero), split into the x rows (wx_f, used only in the
    wrapper pre-projection) and the state rows (ws_f, laid out for the
    [h | m | 0] state slab the kernel carries).  Zero padding rows/cols
    guarantee the extra lanes never leak into results.
    """
    enc_x, enc_h, enc_m, Wx, Wh, Wm, AT, BT = [
        np.asarray(p, dtype=np.float64) for p in params]
    H, I = Wx.shape
    N = AT.shape[0]
    K = I + H + N
    P = _round_up(H + N, 128)        # lane-dense fused state/output width

    E = np.concatenate([enc_x, enc_h, enc_m], axis=1)             # (1, K)
    Wm_comb = E.T @ BT.T                                          # (K, N)
    Wm_comb[I + H:, :] += np.eye(N) + AT.T
    Wh_comb = (np.concatenate([Wx.T, Wh.T, np.zeros((N, H))], axis=0)
               + Wm_comb @ Wm.T)                                  # (K, H)

    W_fused = np.zeros((K, P))
    W_fused[:, :H] = Wh_comb
    W_fused[:, H:H + N] = Wm_comb

    wx_f = jnp.asarray(W_fused[:I], dtype=jnp.float32)            # (I, P)
    ws_np = np.zeros((P, P))
    ws_np[:H + N, :] = W_fused[I:]
    ws_f = jnp.asarray(ws_np, dtype=jnp.float32)                  # (P, P)
    dims = (I, H, N, P)
    return wx_f, ws_f, dims


# ----------------------------------------------------------------------------
# Pallas kernel: t_blk LMU steps per grid step, state resident in VMEM scratch.
# Grid = (batch tiles [parallel], time blocks [arbitrary/serial]).
# ----------------------------------------------------------------------------
def lmu_seq_kernel(px_ref, ws_ref, s0_ref, out_ref, s_ref, *, t_blk, hidden, unroll):
    # (Re)load the recurrent state at the first time-block of every batch tile.
    @pl.when(pl.program_id(1) == 0)
    def _():
        s_ref[...] = s0_ref[...]

    b_tile, p = s_ref.shape
    # Hoisted broadcast (not re-materialized per step): lanes < hidden are the
    # tanh (h) lanes, lanes [hidden, hidden+order) are the linear m lanes.
    is_h_lane = lax.broadcasted_iota(jnp.int32, (b_tile, p), 1) < hidden

    def step(i, carry):
        # Serial chain per step: one MXU matmul + one VPU add (+ EUP tanh).
        pre = px_ref[i] + jnp.dot(s_ref[...], ws_ref[...],
                                  preferred_element_type=jnp.float32)
        s_new = jnp.where(is_h_lane, jnp.tanh(pre), pre)
        s_ref[...] = s_new
        out_ref[i] = s_new
        return carry

    # Partial unroll: chain is serial anyway; full unroll only bloats vreg
    # live ranges once t_blk is large.
    lax.fori_loop(0, t_blk, step, 0, unroll=unroll)


# ----------------------------------------------------------------------------
# Wrappers
# ----------------------------------------------------------------------------
def lmu_sequence_forward(x_seq, h0, m0, fused, *, t_blk=32, b_tile=128):
    """Run T LMU cell steps in one pallas_call.

    x_seq: (T, B, I); h0: (B, H); m0: (B, N).
    Returns (h_seq (T, B, H), (h_T, m_T)).
    """
    wx_f, ws_f, (I, H, N, P) = fused
    T, B, _ = x_seq.shape

    # Time tiling.
    t_blk = max(1, min(int(t_blk), T))
    num_t = pl.cdiv(T, t_blk)
    T_pad = num_t * t_blk

    # Batch tiling (parallel grid axis -> megacore / v7x 2-TC sharding and
    # better MXU row occupancy once the batch is non-trivial).
    B_tile = min(_round_up(max(B, 8), 8), _round_up(max(int(b_tile), 8), 8))
    num_b = pl.cdiv(B, B_tile)
    B_pad = num_b * B_tile

    # Hoisted x-projection: one big XLA matmul over all (T*B) rows; removes the
    # x matmul (and the 128-wide zero-padded x copy) from the serial kernel.
    pre_x = jnp.einsum('tbi,ip->tbp', x_seq.astype(jnp.float32), wx_f)   # (T, B, P)
    px = jnp.zeros((T_pad, B_pad, P), jnp.float32).at[:T, :B, :].set(pre_x)

    # Initial fused state slab [h | m | 0]; padded rows stay inert (all zero).
    s0 = jnp.zeros((B_pad, P), jnp.float32)
    s0 = s0.at[:B, :H].set(h0).at[:B, H:H + N].set(m0)

    # VMEM plan (per batch tile): pipelined px/out blocks (double-buffered),
    # resident weights, s0 and the state scratch.  Capped at 48 MiB to leave
    # headroom on v7x's 64 MiB physical VMEM.
    block_bytes = 4 * (2 * t_blk * B_tile * P       # px block, 2 buffers
                       + 2 * t_blk * B_tile * P     # out block, 2 buffers
                       + 2 * P * P                  # fused state weights
                       + 2 * B_tile * P             # initial state slab
                       + B_tile * P)                # state scratch
    vmem_limit = int(min(48 * 2 ** 20, max(32 * 2 ** 20, 2 * block_bytes)))

    flops = 2 * T_pad * B_pad * P * P + 2 * T_pad * B_pad * P
    bytes_accessed = 4 * (2 * T_pad * B_pad * P + P * P + B_pad * P)

    out = pl.pallas_call(
        partial(lmu_seq_kernel, t_blk=t_blk, hidden=H, unroll=min(8, t_blk)),
        out_shape=jax.ShapeDtypeStruct((T_pad, B_pad, P), jnp.float32),
        grid_spec=pltpu.PrefetchScalarGridSpec(
            num_scalar_prefetch=0,
            grid=(num_b, num_t),
            in_specs=[
                pl.BlockSpec((t_blk, B_tile, P), lambda b, t: (t, b, 0)),  # pre-projected x
                pl.BlockSpec((P, P), lambda b, t: (0, 0)),                 # fused state weights (resident)
                pl.BlockSpec((B_tile, P), lambda b, t: (b, 0)),            # initial state slab
            ],
            out_specs=pl.BlockSpec((t_blk, B_tile, P), lambda b, t: (t, b, 0)),
            scratch_shapes=[pltpu.VMEM((B_tile, P), jnp.float32)],
        ),
        compiler_params=pltpu.CompilerParams(
            dimension_semantics=("parallel", "arbitrary"),   # batch || , time serial
            vmem_limit_bytes=vmem_limit,
        ),
        cost_estimate=pl.CostEstimate(
            flops=int(flops),
            transcendentals=int(T_pad * B_pad * P),
            bytes_accessed=int(bytes_accessed),
        ),
    )(px, ws_f, s0)

    h_seq = out[:T, :B, :H]
    m_last = out[T - 1, :B, H:H + N]
    return h_seq, (h_seq[-1], m_last)


def lmu_cell_forward(x, h, m, fused):
    """Single LMUCell step, matching the PyTorch forward: returns (h, (h, m)).

    Per the performance review, a single (B, ~40) step is XLA-trivial and a
    pallas_call's launch/pipeline prologue dwarfs it, so this path uses the
    same fused algebra in plain XLA; the Pallas path is the fused-sequence
    kernel (lmu_sequence_forward).
    """
    wx_f, ws_f, (I, H, N, P) = fused
    B = x.shape[0]
    s = jnp.zeros((B, P), jnp.float32).at[:, :H].set(h).at[:, H:H + N].set(m)
    pre = x.astype(jnp.float32) @ wx_f + s @ ws_f
    h_new = jnp.tanh(pre[:, :H])
    m_new = pre[:, H:H + N]
    return h_new, (h_new, m_new)


# ----------------------------------------------------------------------------
# Plain-JAX reference of the PyTorch forward (correctness check)
# ----------------------------------------------------------------------------
def reference_forward(x, h, m, params):
    enc_x, enc_h, enc_m, Wx, Wh, Wm, AT, BT = params
    u = x @ enc_x.T + h @ enc_h.T + m @ enc_m.T
    m_new = m + m @ AT.T + u @ BT.T
    h_new = jnp.tanh(x @ Wx.T + h @ Wh.T + m_new @ Wm.T)
    return h_new, m_new


def reference_sequence(x_seq, h0, m0, params):
    h_r, m_r = h0, m0
    hs = []
    for t in range(x_seq.shape[0]):
        h_r, m_r = reference_forward(x_seq[t], h_r, m_r, params)
        hs.append(h_r)
    return jnp.stack(hs), h_r, m_r


if __name__ == "__main__":
    batch, input_size, hidden_size, order, seq_len = 2, 4, 32, 8, 8

    key = jax.random.PRNGKey(0)
    kp, kx, kh, km, ks, ks2 = jax.random.split(key, 6)

    params = make_params(kp, input_size, hidden_size, order, theta=100.0)
    fused = prepare_fused_params(params)           # one-time weight fusion (f64 -> f32)

    x = jax.random.normal(kx, (batch, input_size), jnp.float32)
    h0 = jax.random.normal(kh, (batch, hidden_size), jnp.float32)
    m0 = jax.random.normal(km, (batch, order), jnp.float32)

    # --- single step (exact LMUCell.forward semantics, plain-XLA fused path) ---
    h_out, (h_state, m_state) = lmu_cell_forward(x, h0, m0, fused)
    jax.block_until_ready((h_out, h_state, m_state))
    h_ref, m_ref = reference_forward(x, h0, m0, params)
    np.testing.assert_allclose(np.asarray(h_out), np.asarray(h_ref), rtol=1e-4, atol=1e-4)
    np.testing.assert_allclose(np.asarray(m_state), np.asarray(m_ref), rtol=1e-4, atol=1e-4)

    # --- fused sequence: T steps in a single pallas_call (the Pallas kernel) ---
    x_seq = jax.random.normal(ks, (seq_len, batch, input_size), jnp.float32)
    h_seq, (h_T, m_T) = lmu_sequence_forward(x_seq, h0, m0, fused)
    jax.block_until_ready((h_seq, h_T, m_T))

    h_seq_ref, h_r, m_r = reference_sequence(x_seq, h0, m0, params)
    np.testing.assert_allclose(np.asarray(h_seq), np.asarray(h_seq_ref), rtol=1e-4, atol=1e-4)
    np.testing.assert_allclose(np.asarray(h_T), np.asarray(h_r), rtol=1e-4, atol=1e-4)
    np.testing.assert_allclose(np.asarray(m_T), np.asarray(m_r), rtol=1e-4, atol=1e-4)

    # --- second config: multiple time blocks AND multiple batch tiles
    #     (exercises the "parallel" batch axis and the serial time axis). ---
    T2, B2 = 37, 11
    x_seq2 = jax.random.normal(ks2, (T2, B2, input_size), jnp.float32)
    h02 = jnp.zeros((B2, hidden_size), jnp.float32)
    m02 = jnp.zeros((B2, order), jnp.float32)
    h_seq2, (h_T2, m_T2) = lmu_sequence_forward(x_seq2, h02, m02, fused,
                                                t_blk=16, b_tile=8)
    jax.block_until_ready((h_seq2, h_T2, m_T2))
    h_seq2_ref, h_r2, m_r2 = reference_sequence(x_seq2, h02, m02, params)
    np.testing.assert_allclose(np.asarray(h_seq2), np.asarray(h_seq2_ref), rtol=1e-4, atol=1e-4)
    np.testing.assert_allclose(np.asarray(h_T2), np.asarray(h_r2), rtol=1e-4, atol=1e-4)
    np.testing.assert_allclose(np.asarray(m_T2), np.asarray(m_r2), rtol=1e-4, atol=1e-4)

    print("KERNEL_OK")
</pallas_src>

<mosaic_0001>
module attributes {stable_mosaic.version = 11 : i64} {
  func.func @lmu_seq_kernel(%arg0: i32, %arg1: i32, %arg2: memref<8x8x128xf32, #tpu.memory_space<vmem>>, %arg3: memref<128x128xf32, #tpu.memory_space<vmem>>, %arg4: memref<8x128xf32, #tpu.memory_space<vmem>>, %arg5: memref<8x8x128xf32, #tpu.memory_space<vmem>>, %arg6: memref<8x128xf32, #tpu.memory_space<vmem>>) attributes {dimension_semantics = [#tpu.dimension_semantics<parallel>, #tpu.dimension_semantics<arbitrary>], iteration_bounds = array<i64: 1, 1>, scalar_prefetch = 0 : i64, scratch_operands = 1 : i64, tpu.core_type = #tpu.core_type<tc>, window_params = [{transform_indices = @transform_0, window_bounds = array<i64: 8, 8, 128>}, {pipeline_mode = #tpu.pipeline_mode<synchronous>, transform_indices = @transform_1, window_bounds = array<i64: 128, 128>}, {transform_indices = @transform_2, window_bounds = array<i64: 8, 128>}, {transform_indices = @transform_3, window_bounds = array<i64: 8, 8, 128>}]} {
    %c0_i32 = arith.constant 0 : i32
    %0 = arith.cmpi eq, %arg1, %c0_i32 : i32
    %1 = arith.extui %0 : i1 to i32
    %c0_i32_0 = arith.constant 0 : i32
    %2 = arith.cmpi ne, %1, %c0_i32_0 : i32
    scf.if %2 {
      %c0_88 = arith.constant 0 : index
      %c0_89 = arith.constant 0 : index
      %118 = vector.load %arg4[%c0_88, %c0_89] : memref<8x128xf32, #tpu.memory_space<vmem>>, vector<8x128xf32>
      %c0_90 = arith.constant 0 : index
      %c0_91 = arith.constant 0 : index
      %119 = vector.load %arg6[%c0_90, %c0_91] : memref<8x128xf32, #tpu.memory_space<vmem>>, vector<8x128xf32>
      tpu.vector_store %arg6[%c0_90, %c0_91], %118 {strides = array<i32>} : memref<8x128xf32, #tpu.memory_space<vmem>>, vector<8x128xf32>,
    } else {
    }
    %3 = tpu.iota {dimensions = array<i32: 1>} : vector<8x128xi32>
    %c32_i32 = arith.constant 32 : i32
    %4 = vector.broadcast %c32_i32 : i32 to vector<8x128xi32>
    %5 = arith.cmpi slt, %3, %4 : vector<8x128xi32>
    %c0_i32_1 = arith.constant 0 : i32
    %6 = arith.index_cast %c0_i32_1 : i32 to index
    %c0 = arith.constant 0 : index
    %c0_2 = arith.constant 0 : index
    %7 = vector.load %arg2[%6, %c0, %c0_2] : memref<8x8x128xf32, #tpu.memory_space<vmem>>, vector<1x8x128xf32>
    %8 = vector.shape_cast %7 : vector<1x8x128xf32> to vector<8x128xf32>
    %c0_3 = arith.constant 0 : index
    %c0_4 = arith.constant 0 : index
    %9 = vector.load %arg6[%c0_3, %c0_4] : memref<8x128xf32, #tpu.memory_space<vmem>>, vector<8x128xf32>
    %c0_5 = arith.constant 0 : index
    %c0_6 = arith.constant 0 : index
    %10 = vector.load %arg3[%c0_5, %c0_6] : memref<128x128xf32, #tpu.memory_space<vmem>>, vector<128x128xf32>
    %cst = arith.constant dense<0.000000e+00> : vector<8x128xf32>
    %11 = tpu.matmul %9, %10, %cst {dimension_numbers = #tpu.dot_dimension_numbers<[1], [0], [0], [1], [0, 0, 1, 1], [], []>} : vector<8x128xf32>, vector<128x128xf32>, vector<8x128xf32> -> vector<8x128xf32>
    %12 = arith.addf %8, %11 : vector<8x128xf32>
    %13 = math.tanh %12 : vector<8x128xf32>
    %14 = arith.select %5, %13, %12 : vector<8x128xi1>, vector<8x128xf32>
    %c0_7 = arith.constant 0 : index
    %c0_8 = arith.constant 0 : index
    %15 = vector.load %arg6[%c0_7, %c0_8] : memref<8x128xf32, #tpu.memory_space<vmem>>, vector<8x128xf32>
    tpu.vector_store %arg6[%c0_7, %c0_8], %14 {strides = array<i32>} : memref<8x128xf32, #tpu.memory_space<vmem>>, vector<8x128xf32>,
    %16 = arith.index_cast %c0_i32_1 : i32 to index
    %c0_9 = arith.constant 0 : index
    %c0_10 = arith.constant 0 : index
    %17 = vector.load %arg5[%16, %c0_9, %c0_10] : memref<8x8x128xf32, #tpu.memory_space<vmem>>, vector<1x8x128xf32>
    %18 = vector.shape_cast %17 : vector<1x8x128xf32> to vector<8x128xf32>
    %19 = vector.shape_cast %14 : vector<8x128xf32> to vector<1x8x128xf32>
    tpu.vector_store %arg5[%16, %c0_9, %c0_10], %19 {strides = array<i32>} : memref<8x8x128xf32, #tpu.memory_space<vmem>>, vector<1x8x128xf32>,
    %c1_i32 = arith.constant 1 : i32
    %20 = arith.index_cast %c1_i32 : i32 to index
    %c0_11 = arith.constant 0 : index
    %c0_12 = arith.constant 0 : index
    %21 = vector.load %arg2[%20, %c0_11, %c0_12] : memref<8x8x128xf32, #tpu.memory_space<vmem>>, vector<1x8x128xf32>
    %22 = vector.shape_cast %21 : vector<1x8x128xf32> to vector<8x128xf32>
    %c0_13 = arith.constant 0 : index
    %c0_14 = arith.constant 0 : index
    %23 = vector.load %arg6[%c0_13, %c0_14] : memref<8x128xf32, #tpu.memory_space<vmem>>, vector<8x128xf32>
    %c0_15 = arith.constant 0 : index
    %c0_16 = arith.constant 0 : index
    %24 = vector.load %arg3[%c0_15, %c0_16] : memref<128x128xf32, #tpu.memory_space<vmem>>, vector<128x128xf32>
    %cst_17 = arith.constant dense<0.000000e+00> : vector<8x128xf32>
    %25 = tpu.matmul %23, %24, %cst_17 {dimension_numbers = #tpu.dot_dimension_numbers<[1], [0], [0], [1], [0, 0, 1, 1], [], []>} : vector<8x128xf32>, vector<128x128xf32>, vector<8x128xf32> -> vector<8x128xf32>
    %26 = arith.addf %22, %25 : vector<8x128xf32>
    %27 = math.tanh %26 : vector<8x128xf32>
    %28 = arith.select %5, %27, %26 : vector<8x128xi1>, vector<8x128xf32>
    %c0_18 = arith.constant 0 : index
    %c0_19 = arith.constant 0 : index
    %29 = vector.load %arg6[%c0_18, %c0_19] : memref<8x128xf32, #tpu.memory_space<vmem>>, vector<8x128xf32>
    tpu.vector_store %arg6[%c0_18, %c0_19], %28 {strides = array<i32>} : memref<8x128xf32, #tpu.memory_space<vmem>>, vector<8x128xf32>,
    %30 = arith.index_cast %c1_i32 : i32 to index
    %c0_20 = arith.constant 0 : index
    %c0_21 = arith.constant 0 : index
    %31 = vector.load %arg5[%30, %c0_20, %c0_21] : memref<8x8x128xf32, #tpu.memory_space<vmem>>, vector<1x8x128xf32>
    %32 = vector.shape_cast %31 : vector<1x8x128xf32> to vector<8x128xf32>
    %33 = vector.shape_cast %28 : vector<8x128xf32> to vector<1x8x128xf32>
    tpu.vector_store %arg5[%30, %c0_20, %c0_21], %33 {strides = array<i32>} : memref<8x8x128xf32, #tpu.memory_space<vmem>>, vector<1x8x128xf32>,
    %c2_i32 = arith.constant 2 : i32
    %34 = arith.index_cast %c2_i32 : i32 to index
    %c0_22 = arith.constant 0 : index
    %c0_23 = arith.constant 0 : index
    %35 = vector.load %arg2[%34, %c0_22, %c0_23] : memref<8x8x128xf32, #tpu.memory_space<vmem>>, vector<1x8x128xf32>
    %36 = vector.shape_cast %35 : vector<1x8x128xf32> to vector<8x128xf32>
    %c0_24 = arith.constant 0 : index
    %c0_25 = arith.constant 0 : index
    %37 = vector.load %arg6[%c0_24, %c0_25] : memref<8x128xf32, #tpu.memory_space<vmem>>, vector<8x128xf32>
    %c0_26 = arith.constant 0 : index
    %c0_27 = arith.constant 0 : index
    %38 = vector.load %arg3[%c0_26, %c0_27] : memref<128x128xf32, #tpu.memory_space<vmem>>, vector<128x128xf32>
    %cst_28 = arith.constant dense<0.000000e+00> : vector<8x128xf32>
    %39 = tpu.matmul %37, %38, %cst_28 {dimension_numbers = #tpu.dot_dimension_numbers<[1], [0], [0], [1], [0, 0, 1, 1], [], []>} : vector<8x128xf32>, vector<128x128xf32>, vector<8x128xf32> -> vector<8x128xf32>
    %40 = arith.addf %36, %39 : vector<8x128xf32>
    %41 = math.tanh %40 : vector<8x128xf32>
    %42 = arith.select %5, %41, %40 : vector<8x128xi1>, vector<8x128xf32>
    %c0_29 = arith.constant 0 : index
    %c0_30 = arith.constant 0 : index
    %43 = vector.load %arg6[%c0_29, %c0_30] : memref<8x128xf32, #tpu.memory_space<vmem>>, vector<8x128xf32>
    tpu.vector_store %arg6[%c0_29, %c0_30], %42 {strides = array<i32>} : memref<8x128xf32, #tpu.memory_space<vmem>>, vector<8x128xf32>,
    %44 = arith.index_cast %c2_i32 : i32 to index
    %c0_31 = arith.constant 0 : index
    %c0_32 = arith.constant 0 : index
    %45 = vector.load %arg5[%44, %c0_31, %c0_32] : memref<8x8x128xf32, #tpu.memory_space<vmem>>, vector<1x8x128xf32>
    %46 = vector.shape_cast %45 : vector<1x8x128xf32> to vector<8x128xf32>
    %47 = vector.shape_cast %42 : vector<8x128xf32> to vector<1x8x128xf32>
    tpu.vector_store %arg5[%44, %c0_31, %c0_32], %47 {strides = array<i32>} : memref<8x8x128xf32, #tpu.memory_space<vmem>>, vector<1x8x128xf32>,
    %c3_i32 = arith.constant 3 : i32
    %48 = arith.index_cast %c3_i32 : i32 to index
    %c0_33 = arith.constant 0 : index
    %c0_34 = arith.constant 0 : index
    %49 = vector.load %arg2[%48, %c0_33, %c0_34] : memref<8x8x128xf32, #tpu.memory_space<vmem>>, vector<1x8x128xf32>
    %50 = vector.shape_cast %49 : vector<1x8x128xf32> to vector<8x128xf32>
    %c0_35 = arith.constant 0 : index
    %c0_36 = arith.constant 0 : index
    %51 = vector.load %arg6[%c0_35, %c0_36] : memref<8x128xf32, #tpu.memory_space<vmem>>, vector<8x128xf32>
    %c0_37 = arith.constant 0 : index
    %c0_38 = arith.constant 0 : index
    %52 = vector.load %arg3[%c0_37, %c0_38] : memref<128x128xf32, #tpu.memory_space<vmem>>, vector<128x128xf32>
    %cst_39 = arith.constant dense<0.000000e+00> : vector<8x128xf32>
    %53 = tpu.matmul %51, %52, %cst_39 {dimension_numbers = #tpu.dot_dimension_numbers<[1], [0], [0], [1], [0, 0, 1, 1], [], []>} : vector<8x128xf32>, vector<128x128xf32>, vector<8x128xf32> -> vector<8x128xf32>
    %54 = arith.addf %50, %53 : vector<8x128xf32>
    %55 = math.tanh %54 : vector<8x128xf32>
    %56 = arith.select %5, %55, %54 : vector<8x128xi1>, vector<8x128xf32>
    %c0_40 = arith.constant 0 : index
    %c0_41 = arith.constant 0 : index
    %57 = vector.load %arg6[%c0_40, %c0_41] : memref<8x128xf32, #tpu.memory_space<vmem>>, vector<8x128xf32>
    tpu.vector_store %arg6[%c0_40, %c0_41], %56 {strides = array<i32>} : memref<8x128xf32, #tpu.memory_space<vmem>>, vector<8x128xf32>,
    %58 = arith.index_cast %c3_i32 : i32 to index
    %c0_42 = arith.constant 0 : index
    %c0_43 = arith.constant 0 : index
    %59 = vector.load %arg5[%58, %c0_42, %c0_43] : memref<8x8x128xf32, #tpu.memory_space<vmem>>, vector<1x8x128xf32>
    %60 = vector.shape_cast %59 : vector<1x8x128xf32> to vector<8x128xf32>
    %61 = vector.shape_cast %56 : vector<8x128xf32> to vector<1x8x128xf32>
    tpu.vector_store %arg5[%58, %c0_42, %c0_43], %61 {strides = array<i32>} : memref<8x8x128xf32, #tpu.memory_space<vmem>>, vector<1x8x128xf32>,
    %c4_i32 = arith.constant 4 : i32
    %62 = arith.index_cast %c4_i32 : i32 to index
    %c0_44 = arith.constant 0 : index
    %c0_45 = arith.constant 0 : index
    %63 = vector.load %arg2[%62, %c0_44, %c0_45] : memref<8x8x128xf32, #tpu.memory_space<vmem>>, vector<1x8x128xf32>
    %64 = vector.shape_cast %63 : vector<1x8x128xf32> to vector<8x128xf32>
    %c0_46 = arith.constant 0 : index
    %c0_47 = arith.constant 0 : index
    %65 = vector.load %arg6[%c0_46, %c0_47] : memref<8x128xf32, #tpu.memory_space<vmem>>, vector<8x128xf32>
    %c0_48 = arith.constant 0 : index
    %c0_49 = arith.constant 0 : index
    %66 = vector.load %arg3[%c0_48, %c0_49] : memref<128x128xf32, #tpu.memory_space<vmem>>, vector<128x128xf32>
    %cst_50 = arith.constant dense<0.000000e+00> : vector<8x128xf32>
    %67 = tpu.matmul %65, %66, %cst_50 {dimension_numbers = #tpu.dot_dimension_numbers<[1], [0], [0], [1], [0, 0, 1, 1], [], []>} : vector<8x128xf32>, vector<128x128xf32>, vector<8x128xf32> -> vector<8x128xf32>
    %68 = arith.addf %64, %67 : vector<8x128xf32>
    %69 = math.tanh %68 : vector<8x128xf32>
    %70 = arith.select %5, %69, %68 : vector<8x128xi1>, vector<8x128xf32>
    %c0_51 = arith.constant 0 : index
    %c0_52 = arith.constant 0 : index
    %71 = vector.load %arg6[%c0_51, %c0_52] : memref<8x128xf32, #tpu.memory_space<vmem>>, vector<8x128xf32>
    tpu.vector_store %arg6[%c0_51, %c0_52], %70 {strides = array<i32>} : memref<8x128xf32, #tpu.memory_space<vmem>>, vector<8x128xf32>,
    %72 = arith.index_cast %c4_i32 : i32 to index
    %c0_53 = arith.constant 0 : index
    %c0_54 = arith.constant 0 : index
    %73 = vector.load %arg5[%72, %c0_53, %c0_54] : memref<8x8x128xf32, #tpu.memory_space<vmem>>, vector<1x8x128xf32>
    %74 = vector.shape_cast %73 : vector<1x8x128xf32> to vector<8x128xf32>
    %75 = vector.shape_cast %70 : vector<8x128xf32> to vector<1x8x128xf32>
    tpu.vector_store %arg5[%72, %c0_53, %c0_54], %75 {strides = array<i32>} : memref<8x8x128xf32, #tpu.memory_space<vmem>>, vector<1x8x128xf32>,
    %c5_i32 = arith.constant 5 : i32
    %76 = arith.index_cast %c5_i32 : i32 to index
    %c0_55 = arith.constant 0 : index
    %c0_56 = arith.constant 0 : index
    %77 = vector.load %arg2[%76, %c0_55, %c0_56] : memref<8x8x128xf32, #tpu.memory_space<vmem>>, vector<1x8x128xf32>
    %78 = vector.shape_cast %77 : vector<1x8x128xf32> to vector<8x128xf32>
    %c0_57 = arith.constant 0 : index
    %c0_58 = arith.constant 0 : index
    %79 = vector.load %arg6[%c0_57, %c0_58] : memref<8x128xf32, #tpu.memory_space<vmem>>, vector<8x128xf32>
    %c0_59 = arith.constant 0 : index
    %c0_60 = arith.constant 0 : index
    %80 = vector.load %arg3[%c0_59, %c0_60] : memref<128x128xf32, #tpu.memory_space<vmem>>, vector<128x128xf32>
    %cst_61 = arith.constant dense<0.000000e+00> : vector<8x128xf32>
    %81 = tpu.matmul %79, %80, %cst_61 {dimension_numbers = #tpu.dot_dimension_numbers<[1], [0], [0], [1], [0, 0, 1, 1], [], []>} : vector<8x128xf32>, vector<128x128xf32>, vector<8x128xf32> -> vector<8x128xf32>
    %82 = arith.addf %78, %81 : vector<8x128xf32>
    %83 = math.tanh %82 : vector<8x128xf32>
    %84 = arith.select %5, %83, %82 : vector<8x128xi1>, vector<8x128xf32>
    %c0_62 = arith.constant 0 : index
    %c0_63 = arith.constant 0 : index
    %85 = vector.load %arg6[%c0_62, %c0_63] : memref<8x128xf32, #tpu.memory_space<vmem>>, vector<8x128xf32>
    tpu.vector_store %arg6[%c0_62, %c0_63], %84 {strides = array<i32>} : memref<8x128xf32, #tpu.memory_space<vmem>>, vector<8x128xf32>,
    %86 = arith.index_cast %c5_i32 : i32 to index
    %c0_64 = arith.constant 0 : index
    %c0_65 = arith.constant 0 : index
    %87 = vector.load %arg5[%86, %c0_64, %c0_65] : memref<8x8x128xf32, #tpu.memory_space<vmem>>, vector<1x8x128xf32>
    %88 = vector.shape_cast %87 : vector<1x8x128xf32> to vector<8x128xf32>
    %89 = vector.shape_cast %84 : vector<8x128xf32> to vector<1x8x128xf32>
    tpu.vector_store %arg5[%86, %c0_64, %c0_65], %89 {strides = array<i32>} : memref<8x8x128xf32, #tpu.memory_space<vmem>>, vector<1x8x128xf32>,
    %c6_i32 = arith.constant 6 : i32
    %90 = arith.index_cast %c6_i32 : i32 to index
    %c0_66 = arith.constant 0 : index
    %c0_67 = arith.constant 0 : index
    %91 = vector.load %arg2[%90, %c0_66, %c0_67] : memref<8x8x128xf32, #tpu.memory_space<vmem>>, vector<1x8x128xf32>
    %92 = vector.shape_cast %91 : vector<1x8x128xf32> to vector<8x128xf32>
    %c0_68 = arith.constant 0 : index
    %c0_69 = arith.constant 0 : index
    %93 = vector.load %arg6[%c0_68, %c0_69] : memref<8x128xf32, #tpu.memory_space<vmem>>, vector<8x128xf32>
    %c0_70 = arith.constant 0 : index
    %c0_71 = arith.constant 0 : index
    %94 = vector.load %arg3[%c0_70, %c0_71] : memref<128x128xf32, #tpu.memory_space<vmem>>, vector<128x128xf32>
    %cst_72 = arith.constant dense<0.000000e+00> : vector<8x128xf32>
    %95 = tpu.matmul %93, %94, %cst_72 {dimension_numbers = #tpu.dot_dimension_numbers<[1], [0], [0], [1], [0, 0, 1, 1], [], []>} : vector<8x128xf32>, vector<128x128xf32>, vector<8x128xf32> -> vector<8x128xf32>
    %96 = arith.addf %92, %95 : vector<8x128xf32>
    %97 = math.tanh %96 : vector<8x128xf32>
    %98 = arith.select %5, %97, %96 : vector<8x128xi1>, vector<8x128xf32>
    %c0_73 = arith.constant 0 : index
    %c0_74 = arith.constant 0 : index
    %99 = vector.load %arg6[%c0_73, %c0_74] : memref<8x128xf32, #tpu.memory_space<vmem>>, vector<8x128xf32>
    tpu.vector_store %arg6[%c0_73, %c0_74], %98 {strides = array<i32>} : memref<8x128xf32, #tpu.memory_space<vmem>>, vector<8x128xf32>,
    %100 = arith.index_cast %c6_i32 : i32 to index
    %c0_75 = arith.constant 0 : index
    %c0_76 = arith.constant 0 : index
    %101 = vector.load %arg5[%100, %c0_75, %c0_76] : memref<8x8x128xf32, #tpu.memory_space<vmem>>, vector<1x8x128xf32>
    %102 = vector.shape_cast %101 : vector<1x8x128xf32> to vector<8x128xf32>
    %103 = vector.shape_cast %98 : vector<8x128xf32> to vector<1x8x128xf32>
    tpu.vector_store %arg5[%100, %c0_75, %c0_76], %103 {strides = array<i32>} : memref<8x8x128xf32, #tpu.memory_space<vmem>>, vector<1x8x128xf32>,
    %c7_i32 = arith.constant 7 : i32
    %104 = arith.index_cast %c7_i32 : i32 to index
    %c0_77 = arith.constant 0 : index
    %c0_78 = arith.constant 0 : index
    %105 = vector.load %arg2[%104, %c0_77, %c0_78] : memref<8x8x128xf32, #tpu.memory_space<vmem>>, vector<1x8x128xf32>
    %106 = vector.shape_cast %105 : vector<1x8x128xf32> to vector<8x128xf32>
    %c0_79 = arith.constant 0 : index
    %c0_80 = arith.constant 0 : index
    %107 = vector.load %arg6[%c0_79, %c0_80] : memref<8x128xf32, #tpu.memory_space<vmem>>, vector<8x128xf32>
    %c0_81 = arith.constant 0 : index
    %c0_82 = arith.constant 0 : index
    %108 = vector.load %arg3[%c0_81, %c0_82] : memref<128x128xf32, #tpu.memory_space<vmem>>, vector<128x128xf32>
    %cst_83 = arith.constant dense<0.000000e+00> : vector<8x128xf32>
    %109 = tpu.matmul %107, %108, %cst_83 {dimension_numbers = #tpu.dot_dimension_numbers<[1], [0], [0], [1], [0, 0, 1, 1], [], []>} : vector<8x128xf32>, vector<128x128xf32>, vector<8x128xf32> -> vector<8x128xf32>
    %110 = arith.addf %106, %109 : vector<8x128xf32>
    %111 = math.tanh %110 : vector<8x128xf32>
    %112 = arith.select %5, %111, %110 : vector<8x128xi1>, vector<8x128xf32>
    %c0_84 = arith.constant 0 : index
    %c0_85 = arith.constant 0 : index
    %113 = vector.load %arg6[%c0_84, %c0_85] : memref<8x128xf32, #tpu.memory_space<vmem>>, vector<8x128xf32>
    tpu.vector_store %arg6[%c0_84, %c0_85], %112 {strides = array<i32>} : memref<8x128xf32, #tpu.memory_space<vmem>>, vector<8x128xf32>,
    %114 = arith.index_cast %c7_i32 : i32 to index
    %c0_86 = arith.constant 0 : index
    %c0_87 = arith.constant 0 : index
    %115 = vector.load %arg5[%114, %c0_86, %c0_87] : memref<8x8x128xf32, #tpu.memory_space<vmem>>, vector<1x8x128xf32>
    %116 = vector.shape_cast %115 : vector<1x8x128xf32> to vector<8x128xf32>
    %117 = vector.shape_cast %112 : vector<8x128xf32> to vector<1x8x128xf32>
    tpu.vector_store %arg5[%114, %c0_86, %c0_87], %117 {strides = array<i32>} : memref<8x8x128xf32, #tpu.memory_space<vmem>>, vector<1x8x128xf32>,
    %c8_i32 = arith.constant 8 : i32
    return
  }
  func.func @transform_0(%arg0: i32, %arg1: i32) -> (i32, i32, i32) {
    %c0_i32 = arith.constant 0 : i32
    %c0_i32_0 = arith.constant 0 : i32
    return %arg1, %arg0, %c0_i32 : i32, i32, i32
  }
  func.func @transform_1(%arg0: i32, %arg1: i32) -> (i32, i32) {
    %c0_i32 = arith.constant 0 : i32
    %c0_i32_0 = arith.constant 0 : i32
    %c0_i32_1 = arith.constant 0 : i32
    return %c0_i32, %c0_i32_0 : i32, i32
  }
  func.func @transform_2(%arg0: i32, %arg1: i32) -> (i32, i32) {
    %c0_i32 = arith.constant 0 : i32
    %c0_i32_0 = arith.constant 0 : i32
    return %arg0, %c0_i32 : i32, i32
  }
  func.func @transform_3(%arg0: i32, %arg1: i32) -> (i32, i32, i32) {
    %c0_i32 = arith.constant 0 : i32
    %c0_i32_0 = arith.constant 0 : i32
    return %arg1, %arg0, %c0_i32 : i32, i32, i32
  }
}

</mosaic_0001>

<llo_original>
// kernel: tpu_custom_call.1
$region0: #{tpu_custom_call.1}
  #allocation0 [shape = 'u32[]', space=smem, size = 0x4, offset = 0x4, fixed_abs, tag = 'smem constant byte address 0x4 - core index']
  #allocation1 [shape = 'u32[144,128]{1,0:T(1,128)}', space=vmem, size = 0x12000, scoped, tag = 'internal scratch']
  #allocation2 [shape = 'f32[8,128]{1,0:T(8,128)}', space=vmem, size = 0x1000, scoped, tag = 'scratch operand']
  %s0 = inlined_call_operand.hbm [shape: f32[8,8,128], index: 0, kind: input, shape index: {}]
  %s1 = inlined_call_operand.hbm [shape: f32[128,128], index: 1, kind: input, shape index: {}]
  %s2 = inlined_call_operand.hbm [shape: f32[8,128], index: 2, kind: input, shape index: {}]
  %s3 = inlined_call_operand.hbm [shape: f32[8,8,128], index: 3, kind: output, shape index: {}]
  %s4 = sld [smem:[#allocation0]]
  $region38: #{tpu_custom_call.1} parent=0
    _
  %s6 = ssub.s32 1, %s4
  %s7 = scalar_select 0, %s6, %s4
  $region1: #{tpu_custom_call.1} parent=0
    #allocation3 [shape = 'u8[32768]{0}', space=vmem, size = 0x8000, scoped, tag = 'input window, operand 0, single buffered']
    #allocation4 [shape = 's32[1]{0}', space=sflag, size = 0x4, scoped, tag = 'scoped memory for tpu_custom_call.1']
    #allocation5 [shape = 's32[1]{0}', space=sflag, size = 0x4, scoped, tag = 'scoped memory for tpu_custom_call.1']
    #allocation6 [shape = 'u8[65536]{0}', space=vmem, size = 0x10000, scoped, tag = 'input window, operand 1, single buffered']
    #allocation7 [shape = 's32[1]{0}', space=sflag, size = 0x4, scoped, tag = 'scoped memory for tpu_custom_call.1']
    #allocation8 [shape = 'u8[4096]{0}', space=vmem, size = 0x1000, scoped, tag = 'input window, operand 2, single buffered']
    #allocation9 [shape = 'u8[32768]{0}', space=vmem, size = 0x8000, scoped, tag = 'output window, operand 0, single buffered']
    %8 = vsyncpa [#allocation4], 0
    %9 = vsyncpa [#allocation7], 0
    %10 = vsyncpa [#allocation5], 0
    // Predicated region
    $region2: #{tpu_custom_call.1} parent=1 // pred_check
      _
    $region3: #{tpu_custom_call.1} parent=1 // pred_check_branch
      %12 = sbr.rel (0) target = $region5
    $region4: #{tpu_custom_call.1} parent=1 // pred_region
      %s14 = ssub.s32 1024, 1024
      %15 = vsyncadd [#allocation4], %s14
      %s16 = sshll.u32 [#allocation3], 4
      %s17 = int_to_ptr.vmem [resolvable:$true] %s16
      %22 = dma.hbm_to_vmem [thread:$0]  %s0, 1024, %s17, [#allocation4], 128, 128, 8
    $region5: #{tpu_custom_call.1} parent=1 // pred_fallthru
      _
    // Predicated region
    $region6: #{tpu_custom_call.1} parent=1 // pred_check
      _
    $region7: #{tpu_custom_call.1} parent=1 // pred_check_branch
      %24 = sbr.rel (0) target = $region9
    $region8: #{tpu_custom_call.1} parent=1 // pred_region
      %s26 = ssub.s32 2048, 2048
      %27 = vsyncadd [#allocation7], %s26
      %s28 = sshll.u32 [#allocation6], 4
      %s29 = int_to_ptr.vmem [resolvable:$true] %s28
      %34 = dma.hbm_to_vmem [thread:$0]  %s1, 2048, %s29, [#allocation7], 128, 128, 8
    $region9: #{tpu_custom_call.1} parent=1 // pred_fallthru
      _
    // Predicated region
    $region10: #{tpu_custom_call.1} parent=1 // pred_check
      _
    $region11: #{tpu_custom_call.1} parent=1 // pred_check_branch
      %36 = sbr.rel (0) target = $region13
    $region12: #{tpu_custom_call.1} parent=1 // pred_region
      %s38 = ssub.s32 128, 128
      %39 = vsyncadd [#allocation7], %s38
      %s41 = sshll.u32 [#allocation8], 4
      %s42 = int_to_ptr.vmem [resolvable:$true] %s41
      %44 = dma.hbm_to_vmem [thread:$0]  %s2, 128, %s42, [#allocation7]
    $region13: #{tpu_custom_call.1} parent=1 // pred_fallthru
      _
    // Predicated region
    $region14: #{tpu_custom_call.1} parent=1 // pred_check
      _
    $region15: #{tpu_custom_call.1} parent=1 // pred_check_branch
      %46 = sbr.rel (0) target = $region17
    $region16: #{tpu_custom_call.1} parent=1 // pred_region
      %47 = dma.done [#allocation4], 1024
    $region17: #{tpu_custom_call.1} parent=1 // pred_fallthru
      _
    // Predicated region
    $region18: #{tpu_custom_call.1} parent=1 // pred_check
      _
    $region19: #{tpu_custom_call.1} parent=1 // pred_check_branch
      %49 = sbr.rel (0) target = $region21
    $region20: #{tpu_custom_call.1} parent=1 // pred_region
      %50 = dma.done [#allocation7], 2048
    $region21: #{tpu_custom_call.1} parent=1 // pred_fallthru
      _
    // Predicated region
    $region22: #{tpu_custom_call.1} parent=1 // pred_check
      _
    $region23: #{tpu_custom_call.1} parent=1 // pred_check_branch
      %52 = sbr.rel (0) target = $region25
    $region24: #{tpu_custom_call.1} parent=1 // pred_region
      %53 = dma.done [#allocation7], 128
    $region25: #{tpu_custom_call.1} parent=1 // pred_fallthru
      _
    %p54 = scmp.eq.s32.totalorder 0, 0
    // Predicated region
    $region26: #{tpu_custom_call.1} parent=1 // pred_check
      %p55 = pneg %p54
    $region27: #{tpu_custom_call.1} parent=1 // pred_check_branch
      %57 = sbr.rel (%p55) target = $region29
    $region28: #{tpu_custom_call.1} parent=1 // pred_region
      %v58 = vld [vmem:[#allocation8] sm:$0xff]
      %59 = vst [vmem:[#allocation2] sm:$0xff] %v58
    $region29: #{tpu_custom_call.1} parent=1 // pred_fallthru
      _
    %v60 = vlaneseq
    %v61 = vand.u32 %v60, 127
    %vm62 = vcmp.lt.s32.totalorder %v61, 32
    %v63 = vld [vmem:[#allocation3] sm:$0xff]
    %v64 = vld [vmem:[#allocation2] sm:$0xff]
    %v65 = vld [vmem:[#allocation6] sm:$0xff]
    %v66 = vld [vmem:[#allocation6 + $0x8] sm:$0xff]
    %v67 = vld [vmem:[#allocation6 + $0x10] sm:$0xff]
    %v68 = vld [vmem:[#allocation6 + $0x18] sm:$0xff]
    %v69 = vld [vmem:[#allocation6 + $0x20] sm:$0xff]
    %v70 = vld [vmem:[#allocation6 + $0x28] sm:$0xff]
    %v71 = vld [vmem:[#allocation6 + $0x30] sm:$0xff]
    %v72 = vld [vmem:[#allocation6 + $0x38] sm:$0xff]
    %v73 = vld [vmem:[#allocation6 + $0x40] sm:$0xff]
    %v74 = vld [vmem:[#allocation6 + $0x48] sm:$0xff]
    %v75 = vld [vmem:[#allocation6 + $0x50] sm:$0xff]
    %v76 = vld [vmem:[#allocation6 + $0x58] sm:$0xff]
    %v77 = vld [vmem:[#allocation6 + $0x60] sm:$0xff]
    %v78 = vld [vmem:[#allocation6 + $0x68] sm:$0xff]
    %v79 = vld [vmem:[#allocation6 + $0x70] sm:$0xff]
    %v80 = vld [vmem:[#allocation6 + $0x78] sm:$0xff]
    %81 = vmatprep.subr.mxu0 0.0
    %82 = vmatpush1.msra.mxu0 %v80
    %83 = vmatprep.subr.mxu0 0.0
    %84 = vmatpush1.msra.mxu0 %v79
    %85 = vmatprep.subr.mxu0 0.0
    %86 = vmatpush1.msra.mxu0 %v78
    %87 = vmatprep.subr.mxu0 0.0
    %88 = vmatpush1.msra.mxu0 %v77
    %89 = vmatprep.subr.mxu0 0.0
    %90 = vmatpush1.msra.mxu0 %v76
    %91 = vmatprep.subr.mxu0 0.0
    %92 = vmatpush1.msra.mxu0 %v75
    %93 = vmatprep.subr.mxu0 0.0
    %94 = vmatpush1.msra.mxu0 %v74
    %95 = vmatprep.subr.mxu0 0.0
    %96 = vmatpush1.msra.mxu0 %v73
    %97 = vmatprep.subr.mxu0 0.0
    %98 = vmatpush1.msra.mxu0 %v72
    %99 = vmatprep.subr.mxu0 0.0
    %100 = vmatpush1.msra.mxu0 %v71
    %101 = vmatprep.subr.mxu0 0.0
    %102 = vmatpush1.msra.mxu0 %v70
    %103 = vmatprep.subr.mxu0 0.0
    %104 = vmatpush1.msra.mxu0 %v69
    %105 = vmatprep.subr.mxu0 0.0
    %106 = vmatpush1.msra.mxu0 %v68
    %107 = vmatprep.subr.mxu0 0.0
    %108 = vmatpush1.msra.mxu0 %v67
    %109 = vmatprep.subr.mxu0 0.0
    %110 = vmatpush1.msra.mxu0 %v66
    %111 = vmatprep.subr.mxu0 0.0
    %112 = vmatpush1.msra.mxu0 %v65
    %113 = vmatprep.subr.mxu0 0.0
    %114 = vmatpush2.msra.mxu0 0.0
    %115 = vmatprep.subr.mxu0 0.0
    %116 = vmatpush2.msra.mxu0 0.0
    %117 = vmatprep.subr.mxu0 0.0
    %118 = vmatpush2.msra.mxu0 0.0
    %119 = vmatprep.subr.mxu0 0.0
    %120 = vmatpush2.msra.mxu0 0.0
    %121 = vmatprep.subr.mxu0 0.0
    %122 = vmatpush2.msra.mxu0 0.0
    %123 = vmatprep.subr.mxu0 0.0
    %124 = vmatpush2.msra.mxu0 0.0
    %125 = vmatprep.subr.mxu0 0.0
    %126 = vmatpush2.msra.mxu0 0.0
    %127 = vmatprep.subr.mxu0 0.0
    %128 = vmatpush2.msra.mxu0 0.0
    %129 = vmatprep.subr.mxu0 0.0
    %130 = vmatpush2.msra.mxu0 0.0
    %131 = vmatprep.subr.mxu0 0.0
    %132 = vmatpush2.msra.mxu0 0.0
    %133 = vmatprep.subr.mxu0 0.0
    %134 = vmatpush2.msra.mxu0 0.0
    %135 = vmatprep.subr.mxu0 0.0
    %136 = vmatpush2.msra.mxu0 0.0
    %137 = vmatprep.subr.mxu0 0.0
    %138 = vmatpush2.msra.mxu0 0.0
    %139 = vmatprep.subr.mxu0 0.0
    %140 = vmatpush2.msra.mxu0 0.0
    %141 = vmatprep.subr.mxu0 0.0
    %142 = vmatpush2.msra.mxu0 0.0
    %143 = vmatprep.subr.mxu0 0.0
    %144 = vmatpush2.msra.mxu0 0.0
    %145 = vmatprep.mubr.f32.mxu0 0.0
    %146 = vmatmul.mubr.f32.gmra.mxu0 %v64
    %v147 = vpop.f32.mrf.mxu0
    %v148 = vadd.f32 0.0, %v147
    %v149 = vpop.f32.mrf.mxu0
    %150 = vdwg.mxu0
    %v151 = vadd.f32 %v63, %v148
    %v152 = vtanh.pop %v151
    %v153 = vsel %vm62, %v152, %v151
    %154 = vst [vmem:[#allocation2] sm:$0xff] %v153
    %155 = vst [vmem:[#allocation9] sm:$0xff] %v153
    %s156 = scalar_lea.vmem [#allocation3], 8
    %v157 = vld [vmem:[%s156] sm:$0xff]
    %v158 = vld [vmem:[#allocation2] sm:$0xff]
    %v159 = vld [vmem:[#allocation6] sm:$0xff]
    %v160 = vld [vmem:[#allocation6 + $0x8] sm:$0xff]
    %v161 = vld [vmem:[#allocation6 + $0x10] sm:$0xff]
    %v162 = vld [vmem:[#allocation6 + $0x18] sm:$0xff]
    %v163 = vld [vmem:[#allocation6 + $0x20] sm:$0xff]
    %v164 = vld [vmem:[#allocation6 + $0x28] sm:$0xff]
    %v165 = vld [vmem:[#allocation6 + $0x30] sm:$0xff]
    %v166 = vld [vmem:[#allocation6 + $0x38] sm:$0xff]
    %v167 = vld [vmem:[#allocation6 + $0x40] sm:$0xff]
    %v168 = vld [vmem:[#allocation6 + $0x48] sm:$0xff]
    %v169 = vld [vmem:[#allocation6 + $0x50] sm:$0xff]
    %v170 = vld [vmem:[#allocation6 + $0x58] sm:$0xff]
    %v171 = vld [vmem:[#allocation6 + $0x60] sm:$0xff]
    %v172 = vld [vmem:[#allocation6 + $0x68] sm:$0xff]
    %v173 = vld [vmem:[#allocation6 + $0x70] sm:$0xff]
    %v174 = vld [vmem:[#allocation6 + $0x78] sm:$0xff]
    %175 = vmatprep.subr.mxu0 0.0
    %176 = vmatpush1.msra.mxu0 %v174
    %177 = vmatprep.subr.mxu0 0.0
    %178 = vmatpush1.msra.mxu0 %v173
    %179 = vmatprep.subr.mxu0 0.0
    %180 = vmatpush1.msra.mxu0 %v172
    %181 = vmatprep.subr.mxu0 0.0
    %182 = vmatpush1.msra.mxu0 %v171
    %183 = vmatprep.subr.mxu0 0.0
    %184 = vmatpush1.msra.mxu0 %v170
    %185 = vmatprep.subr.mxu0 0.0
    %186 = vmatpush1.msra.mxu0 %v169
    %187 = vmatprep.subr.mxu0 0.0
    %188 = vmatpush1.msra.mxu0 %v168
    %189 = vmatprep.subr.mxu0 0.0
    %190 = vmatpush1.msra.mxu0 %v167
    %191 = vmatprep.subr.mxu0 0.0
    %192 = vmatpush1.msra.mxu0 %v166
    %193 = vmatprep.subr.mxu0 0.0
    %194 = vmatpush1.msra.mxu0 %v165
    %195 = vmatprep.subr.mxu0 0.0
    %196 = vmatpush1.msra.mxu0 %v164
    %197 = vmatprep.subr.mxu0 0.0
    %198 = vmatpush1.msra.mxu0 %v163
    %199 = vmatprep.subr.mxu0 0.0
    %200 = vmatpush1.msra.mxu0 %v162
    %201 = vmatprep.subr.mxu0 0.0
    %202 = vmatpush1.msra.mxu0 %v161
    %203 = vmatprep.subr.mxu0 0.0
    %204 = vmatpush1.msra.mxu0 %v160
    %205 = vmatprep.subr.mxu0 0.0
    %206 = vmatpush1.msra.mxu0 %v159
    %207 = vmatprep.subr.mxu0 0.0
    %208 = vmatpush2.msra.mxu0 0.0
    %209 = vmatprep.subr.mxu0 0.0
    %210 = vmatpush2.msra.mxu0 0.0
    %211 = vmatprep.subr.mxu0 0.0
    %212 = vmatpush2.msra.mxu0 0.0
    %213 = vmatprep.subr.mxu0 0.0
    %214 = vmatpush2.msra.mxu0 0.0
    %215 = vmatprep.subr.mxu0 0.0
    %216 = vmatpush2.msra.mxu0 0.0
    %217 = vmatprep.subr.mxu0 0.0
    %218 = vmatpush2.msra.mxu0 0.0
    %219 = vmatprep.subr.mxu0 0.0
    %220 = vmatpush2.msra.mxu0 0.0
    %221 = vmatprep.subr.mxu0 0.0
    %222 = vmatpush2.msra.mxu0 0.0
    %223 = vmatprep.subr.mxu0 0.0
    %224 = vmatpush2.msra.mxu0 0.0
    %225 = vmatprep.subr.mxu0 0.0
    %226 = vmatpush2.msra.mxu0 0.0
    %227 = vmatprep.subr.mxu0 0.0
    %228 = vmatpush2.msra.mxu0 0.0
    %229 = vmatprep.subr.mxu0 0.0
    %230 = vmatpush2.msra.mxu0 0.0
    %231 = vmatprep.subr.mxu0 0.0
    %232 = vmatpush2.msra.mxu0 0.0
    %233 = vmatprep.subr.mxu0 0.0
    %234 = vmatpush2.msra.mxu0 0.0
    %235 = vmatprep.subr.mxu0 0.0
    %236 = vmatpush2.msra.mxu0 0.0
    %237 = vmatprep.subr.mxu0 0.0
    %238 = vmatpush2.msra.mxu0 0.0
    %239 = vmatprep.mubr.f32.mxu0 0.0
    %240 = vmatmul.mubr.f32.gmra.mxu0 %v158
    %v241 = vpop.f32.mrf.mxu0
    %v242 = vadd.f32 0.0, %v241
    %v243 = vpop.f32.mrf.mxu0
    %244 = vdwg.mxu0
    %v245 = vadd.f32 %v157, %v242
    %v246 = vtanh.pop %v245
    %v247 = vsel %vm62, %v246, %v245
    %248 = vst [vmem:[#allocation2] sm:$0xff] %v247
    %s249 = scalar_lea.vmem [#allocation9], 8
    %250 = vst [vmem:[%s249] sm:$0xff] %v247
    %s251 = scalar_lea.vmem [#allocation3], 16
    %v252 = vld [vmem:[%s251] sm:$0xff]
    %v253 = vld [vmem:[#allocation2] sm:$0xff]
    %v254 = vld [vmem:[#allocation6] sm:$0xff]
    %v255 = vld [vmem:[#allocation6 + $0x8] sm:$0xff]
    %v256 = vld [vmem:[#allocation6 + $0x10] sm:$0xff]
    %v257 = vld [vmem:[#allocation6 + $0x18] sm:$0xff]
    %v258 = vld [vmem:[#allocation6 + $0x20] sm:$0xff]
    %v259 = vld [vmem:[#allocation6 + $0x28] sm:$0xff]
    %v260 = vld [vmem:[#allocation6 + $0x30] sm:$0xff]
    %v261 = vld [vmem:[#allocation6 + $0x38] sm:$0xff]
    %v262 = vld [vmem:[#allocation6 + $0x40] sm:$0xff]
    %v263 = vld [vmem:[#allocation6 + $0x48] sm:$0xff]
    %v264 = vld [vmem:[#allocation6 + $0x50] sm:$0xff]
    %v265 = vld [vmem:[#allocation6 + $0x58] sm:$0xff]
    %v266 = vld [vmem:[#allocation6 + $0x60] sm:$0xff]
    %v267 = vld [vmem:[#allocation6 + $0x68] sm:$0xff]
    %v268 = vld [vmem:[#allocation6 + $0x70] sm:$0xff]
    %v269 = vld [vmem:[#allocation6 + $0x78] sm:$0xff]
    %270 = vmatprep.subr.mxu0 0.0
    %271 = vmatpush1.msra.mxu0 %v269
    %272 = vmatprep.subr.mxu0 0.0
    %273 = vmatpush1.msra.mxu0 %v268
    %274 = vmatprep.subr.mxu0 0.0
    %275 = vmatpush1.msra.mxu0 %v267
    %276 = vmatprep.subr.mxu0 0.0
    %277 = vmatpush1.msra.mxu0 %v266
    %278 = vmatprep.subr.mxu0 0.0
    %279 = vmatpush1.msra.mxu0 %v265
    %280 = vmatprep.subr.mxu0 0.0
    %281 = vmatpush1.msra.mxu0 %v264
    %282 = vmatprep.subr.mxu0 0.0
    %283 = vmatpush1.msra.mxu0 %v263
    %284 = vmatprep.subr.mxu0 0.0
    %285 = vmatpush1.msra.mxu0 %v262
    %286 = vmatprep.subr.mxu0 0.0
    %287 = vmatpush1.msra.mxu0 %v261
    %288 = vmatprep.subr.mxu0 0.0
    %289 = vmatpush1.msra.mxu0 %v260
    %290 = vmatprep.subr.mxu0 0.0
    %291 = vmatpush1.msra.mxu0 %v259
    %292 = vmatprep.subr.mxu0 0.0
    %293 = vmatpush1.msra.mxu0 %v258
    %294 = vmatprep.subr.mxu0 0.0
    %295 = vmatpush1.msra.mxu0 %v257
    %296 = vmatprep.subr.mxu0 0.0
    %297 = vmatpush1.msra.mxu0 %v256
    %298 = vmatprep.subr.mxu0 0.0
    %299 = vmatpush1.msra.mxu0 %v255
    %300 = vmatprep.subr.mxu0 0.0
    %301 = vmatpush1.msra.mxu0 %v254
    %302 = vmatprep.subr.mxu0 0.0
    %303 = vmatpush2.msra.mxu0 0.0
    %304 = vmatprep.subr.mxu0 0.0
    %305 = vmatpush2.msra.mxu0 0.0
    %306 = vmatprep.subr.mxu0 0.0
    %307 = vmatpush2.msra.mxu0 0.0
    %308 = vmatprep.subr.mxu0 0.0
    %309 = vmatpush2.msra.mxu0 0.0
    %310 = vmatprep.subr.mxu0 0.0
    %311 = vmatpush2.msra.mxu0 0.0
    %312 = vmatprep.subr.mxu0 0.0
    %313 = vmatpush2.msra.mxu0 0.0
    %314 = vmatprep.subr.mxu0 0.0
    %315 = vmatpush2.msra.mxu0 0.0
    %316 = vmatprep.subr.mxu0 0.0
    %317 = vmatpush2.msra.mxu0 0.0
    %318 = vmatprep.subr.mxu0 0.0
    %319 = vmatpush2.msra.mxu0 0.0
    %320 = vmatprep.subr.mxu0 0.0
    %321 = vmatpush2.msra.mxu0 0.0
    %322 = vmatprep.subr.mxu0 0.0
    %323 = vmatpush2.msra.mxu0 0.0
    %324 = vmatprep.subr.mxu0 0.0
    %325 = vmatpush2.msra.mxu0 0.0
    %326 = vmatprep.subr.mxu0 0.0
    %327 = vmatpush2.msra.mxu0 0.0
    %328 = vmatprep.subr.mxu0 0.0
    %329 = vmatpush2.msra.mxu0 0.0
    %330 = vmatprep.subr.mxu0 0.0
    %331 = vmatpush2.msra.mxu0 0.0
    %332 = vmatprep.subr.mxu0 0.0
    %333 = vmatpush2.msra.mxu0 0.0
    %334 = vmatprep.mubr.f32.mxu0 0.0
    %335 = vmatmul.mubr.f32.gmra.mxu0 %v253
    %v336 = vpop.f32.mrf.mxu0
    %v337 = vadd.f32 0.0, %v336
    %v338 = vpop.f32.mrf.mxu0
    %339 = vdwg.mxu0
    %v340 = vadd.f32 %v252, %v337
    %v341 = vtanh.pop %v340
    %v342 = vsel %vm62, %v341, %v340
    %343 = vst [vmem:[#allocation2] sm:$0xff] %v342
    %s344 = scalar_lea.vmem [#allocation9], 16
    %345 = vst [vmem:[%s344] sm:$0xff] %v342
    %s346 = scalar_lea.vmem [#allocation3], 24
    %v347 = vld [vmem:[%s346] sm:$0xff]
    %v348 = vld [vmem:[#allocation2] sm:$0xff]
    %v349 = vld [vmem:[#allocation6] sm:$0xff]
    %v350 = vld [vmem:[#allocation6 + $0x8] sm:$0xff]
    %v351 = vld [vmem:[#allocation6 + $0x10] sm:$0xff]
    %v352 = vld [vmem:[#allocation6 + $0x18] sm:$0xff]
    %v353 = vld [vmem:[#allocation6 + $0x20] sm:$0xff]
    %v354 = vld [vmem:[#allocation6 + $0x28] sm:$0xff]
    %v355 = vld [vmem:[#allocation6 + $0x30] sm:$0xff]
    %v356 = vld [vmem:[#allocation6 + $0x38] sm:$0xff]
    %v357 = vld [vmem:[#allocation6 + $0x40] sm:$0xff]
    %v358 = vld [vmem:[#allocation6 + $0x48] sm:$0xff]
    %v359 = vld [vmem:[#allocation6 + $0x50] sm:$0xff]
    %v360 = vld [vmem:[#allocation6 + $0x58] sm:$0xff]
    %v361 = vld [vmem:[#allocation6 + $0x60] sm:$0xff]
    %v362 = vld [vmem:[#allocation6 + $0x68] sm:$0xff]
    %v363 = vld [vmem:[#allocation6 + $0x70] sm:$0xff]
    %v364 = vld [vmem:[#allocation6 + $0x78] sm:$0xff]
    %365 = vmatprep.subr.mxu0 0.0
    %366 = vmatpush1.msra.mxu0 %v364
    %367 = vmatprep.subr.mxu0 0.0
    %368 = vmatpush1.msra.mxu0 %v363
    %369 = vmatprep.subr.mxu0 0.0
    %370 = vmatpush1.msra.mxu0 %v362
    %371 = vmatprep.subr.mxu0 0.0
    %372 = vmatpush1.msra.mxu0 %v361
    %373 = vmatprep.subr.mxu0 0.0
    %374 = vmatpush1.msra.mxu0 %v360
    %375 = vmatprep.subr.mxu0 0.0
    %376 = vmatpush1.msra.mxu0 %v359
    %377 = vmatprep.subr.mxu0 0.0
    %378 = vmatpush1.msra.mxu0 %v358
    %379 = vmatprep.subr.mxu0 0.0
    %380 = vmatpush1.msra.mxu0 %v357
    %381 = vmatprep.subr.mxu0 0.0
    %382 = vmatpush1.msra.mxu0 %v356
    %383 = vmatprep.subr.mxu0 0.0
    %384 = vmatpush1.msra.mxu0 %v355
    %385 = vmatprep.subr.mxu0 0.0
    %386 = vmatpush1.msra.mxu0 %v354
    %387 = vmatprep.subr.mxu0 0.0
    %388 = vmatpush1.msra.mxu0 %v353
    %389 = vmatprep.subr.mxu0 0.0
    %390 = vmatpush1.msra.mxu0 %v352
    %391 = vmatprep.subr.mxu0 0.0
    %392 = vmatpush1.msra.mxu0 %v351
    %393 = vmatprep.subr.mxu0 0.0
    %394 = vmatpush1.msra.mxu0 %v350
    %395 = vmatprep.subr.mxu0 0.0
    %396 = vmatpush1.msra.mxu0 %v349
    %397 = vmatprep.subr.mxu0 0.0
    %398 = vmatpush2.msra.mxu0 0.0
    %399 = vmatprep.subr.mxu0 0.0
    %400 = vmatpush2.msra.mxu0 0.0
    %401 = vmatprep.subr.mxu0 0.0
    %402 = vmatpush2.msra.mxu0 0.0
    %403 = vmatprep.subr.mxu0 0.0
    %404 = vmatpush2.msra.mxu0 0.0
    %405 = vmatprep.subr.mxu0 0.0
    %406 = vmatpush2.msra.mxu0 0.0
    %407 = vmatprep.subr.mxu0 0.0
    %408 = vmatpush2.msra.mxu0 0.0
    %409 = vmatprep.subr.mxu0 0.0
    %410 = vmatpush2.msra.mxu0 0.0
    %411 = vmatprep.subr.mxu0 0.0
    %412 = vmatpush2.msra.mxu0 0.0
    %413 = vmatprep.subr.mxu0 0.0
    %414 = vmatpush2.msra.mxu0 0.0
    %415 = vmatprep.subr.mxu0 0.0
    %416 = vmatpush2.msra.mxu0 0.0
    %417 = vmatprep.subr.mxu0 0.0
    %418 = vmatpush2.msra.mxu0 0.0
    %419 = vmatprep.subr.mxu0 0.0
    %420 = vmatpush2.msra.mxu0 0.0
    %421 = vmatprep.subr.mxu0 0.0
    %422 = vmatpush2.msra.mxu0 0.0
    %423 = vmatprep.subr.mxu0 0.0
    %424 = vmatpush2.msra.mxu0 0.0
    %425 = vmatprep.subr.mxu0 0.0
    %426 = vmatpush2.msra.mxu0 0.0
    %427 = vmatprep.subr.mxu0 0.0
    %428 = vmatpush2.msra.mxu0 0.0
    %429 = vmatprep.mubr.f32.mxu0 0.0
    %430 = vmatmul.mubr.f32.gmra.mxu0 %v348
    %v431 = vpop.f32.mrf.mxu0
    %v432 = vadd.f32 0.0, %v431
    %v433 = vpop.f32.mrf.mxu0
    %434 = vdwg.mxu0
    %v435 = vadd.f32 %v347, %v432
    %v436 = vtanh.pop %v435
    %v437 = vsel %vm62, %v436, %v435
    %438 = vst [vmem:[#allocation2] sm:$0xff] %v437
    %s439 = scalar_lea.vmem [#allocation9], 24
    %440 = vst [vmem:[%s439] sm:$0xff] %v437
    %s441 = scalar_lea.vmem [#allocation3], 32
    %v442 = vld [vmem:[%s441] sm:$0xff]
    %v443 = vld [vmem:[#allocation2] sm:$0xff]
    %v444 = vld [vmem:[#allocation6] sm:$0xff]
    %v445 = vld [vmem:[#allocation6 + $0x8] sm:$0xff]
    %v446 = vld [vmem:[#allocation6 + $0x10] sm:$0xff]
    %v447 = vld [vmem:[#allocation6 + $0x18] sm:$0xff]
    %v448 = vld [vmem:[#allocation6 + $0x20] sm:$0xff]
    %v449 = vld [vmem:[#allocation6 + $0x28] sm:$0xff]
    %v450 = vld [vmem:[#allocation6 + $0x30] sm:$0xff]
    %v451 = vld [vmem:[#allocation6 + $0x38] sm:$0xff]
    %v452 = vld [vmem:[#allocation6 + $0x40] sm:$0xff]
    %v453 = vld [vmem:[#allocation6 + $0x48] sm:$0xff]
    %v454 = vld [vmem:[#allocation6 + $0x50] sm:$0xff]
    %v455 = vld [vmem:[#allocation6 + $0x58] sm:$0xff]
    %v456 = vld [vmem:[#allocation6 + $0x60] sm:$0xff]
    %v457 = vld [vmem:[#allocation6 + $0x68] sm:$0xff]
    %v458 = vld [vmem:[#allocation6 + $0x70] sm:$0xff]
    %v459 = vld [vmem:[#allocation6 + $0x78] sm:$0xff]
    %460 = vmatprep.subr.mxu0 0.0
    %461 = vmatpush1.msra.mxu0 %v459
    %462 = vmatprep.subr.mxu0 0.0
    %463 = vmatpush1.msra.mxu0 %v458
    %464 = vmatprep.subr.mxu0 0.0
    %465 = vmatpush1.msra.mxu0 %v457
    %466 = vmatprep.subr.mxu0 0.0
    %467 = vmatpush1.msra.mxu0 %v456
    %468 = vmatprep.subr.mxu0 0.0
    %469 = vmatpush1.msra.mxu0 %v455
    %470 = vmatprep.subr.mxu0 0.0
    %471 = vmatpush1.msra.mxu0 %v454
    %472 = vmatprep.subr.mxu0 0.0
    %473 = vmatpush1.msra.mxu0 %v453
    %474 = vmatprep.subr.mxu0 0.0
    %475 = vmatpush1.msra.mxu0 %v452
    %476 = vmatprep.subr.mxu0 0.0
    %477 = vmatpush1.msra.mxu0 %v451
    %478 = vmatprep.subr.mxu0 0.0
    %479 = vmatpush1.msra.mxu0 %v450
    %480 = vmatprep.subr.mxu0 0.0
    %481 = vmatpush1.msra.mxu0 %v449
    %482 = vmatprep.subr.mxu0 0.0
    %483 = vmatpush1.msra.mxu0 %v448
    %484 = vmatprep.subr.mxu0 0.0
    %485 = vmatpush1.msra.mxu0 %v447
    %486 = vmatprep.subr.mxu0 0.0
    %487 = vmatpush1.msra.mxu0 %v446
    %488 = vmatprep.subr.mxu0 0.0
    %489 = vmatpush1.msra.mxu0 %v445
    %490 = vmatprep.subr.mxu0 0.0
    %491 = vmatpush1.msra.mxu0 %v444
    %492 = vmatprep.subr.mxu0 0.0
    %493 = vmatpush2.msra.mxu0 0.0
    %494 = vmatprep.subr.mxu0 0.0
    %495 = vmatpush2.msra.mxu0 0.0
    %496 = vmatprep.subr.mxu0 0.0
    %497 = vmatpush2.msra.mxu0 0.0
    %498 = vmatprep.subr.mxu0 0.0
    %499 = vmatpush2.msra.mxu0 0.0
    %500 = vmatprep.subr.mxu0 0.0
    %501 = vmatpush2.msra.mxu0 0.0
    %502 = vmatprep.subr.mxu0 0.0
    %503 = vmatpush2.msra.mxu0 0.0
    %504 = vmatprep.subr.mxu0 0.0
    %505 = vmatpush2.msra.mxu0 0.0
    %506 = vmatprep.subr.mxu0 0.0
    %507 = vmatpush2.msra.mxu0 0.0
    %508 = vmatprep.subr.mxu0 0.0
    %509 = vmatpush2.msra.mxu0 0.0
    %510 = vmatprep.subr.mxu0 0.0
    %511 = vmatpush2.msra.mxu0 0.0
    %512 = vmatprep.subr.mxu0 0.0
    %513 = vmatpush2.msra.mxu0 0.0
    %514 = vmatprep.subr.mxu0 0.0
    %515 = vmatpush2.msra.mxu0 0.0
    %516 = vmatprep.subr.mxu0 0.0
    %517 = vmatpush2.msra.mxu0 0.0
    %518 = vmatprep.subr.mxu0 0.0
    %519 = vmatpush2.msra.mxu0 0.0
    %520 = vmatprep.subr.mxu0 0.0
    %521 = vmatpush2.msra.mxu0 0.0
    %522 = vmatprep.subr.mxu0 0.0
    %523 = vmatpush2.msra.mxu0 0.0
    %524 = vmatprep.mubr.f32.mxu0 0.0
    %525 = vmatmul.mubr.f32.gmra.mxu0 %v443
    %v526 = vpop.f32.mrf.mxu0
    %v527 = vadd.f32 0.0, %v526
    %v528 = vpop.f32.mrf.mxu0
    %529 = vdwg.mxu0
    %v530 = vadd.f32 %v442, %v527
    %v531 = vtanh.pop %v530
    %v532 = vsel %vm62, %v531, %v530
    %533 = vst [vmem:[#allocation2] sm:$0xff] %v532
    %s534 = scalar_lea.vmem [#allocation9], 32
    %535 = vst [vmem:[%s534] sm:$0xff] %v532
    %s536 = scalar_lea.vmem [#allocation3], 40
    %v537 = vld [vmem:[%s536] sm:$0xff]
    %v538 = vld [vmem:[#allocation2] sm:$0xff]
    %v539 = vld [vmem:[#allocation6] sm:$0xff]
    %v540 = vld [vmem:[#allocation6 + $0x8] sm:$0xff]
    %v541 = vld [vmem:[#allocation6 + $0x10] sm:$0xff]
    %v542 = vld [vmem:[#allocation6 + $0x18] sm:$0xff]
    %v543 = vld [vmem:[#allocation6 + $0x20] sm:$0xff]
    %v544 = vld [vmem:[#allocation6 + $0x28] sm:$0xff]
    %v545 = vld [vmem:[#allocation6 + $0x30] sm:$0xff]
    %v546 = vld [vmem:[#allocation6 + $0x38] sm:$0xff]
    %v547 = vld [vmem:[#allocation6 + $0x40] sm:$0xff]
    %v548 = vld [vmem:[#allocation6 + $0x48] sm:$0xff]
    %v549 = vld [vmem:[#allocation6 + $0x50] sm:$0xff]
    %v550 = vld [vmem:[#allocation6 + $0x58] sm:$0xff]
    %v551 = vld [vmem:[#allocation6 + $0x60] sm:$0xff]
    %v552 = vld [vmem:[#allocation6 + $0x68] sm:$0xff]
    %v553 = vld [vmem:[#allocation6 + $0x70] sm:$0xff]
    %v554 = vld [vmem:[#allocation6 + $0x78] sm:$0xff]
    %555 = vmatprep.subr.mxu0 0.0
    %556 = vmatpush1.msra.mxu0 %v554
    %557 = vmatprep.subr.mxu0 0.0
    %558 = vmatpush1.msra.mxu0 %v553
    %559 = vmatprep.subr.mxu0 0.0
    %560 = vmatpush1.msra.mxu0 %v552
    %561 = vmatprep.subr.mxu0 0.0
    %562 = vmatpush1.msra.mxu0 %v551
    %563 = vmatprep.subr.mxu0 0.0
    %564 = vmatpush1.msra.mxu0 %v550
    %565 = vmatprep.subr.mxu0 0.0
    %566 = vmatpush1.msra.mxu0 %v549
    %567 = vmatprep.subr.mxu0 0.0
    %568 = vmatpush1.msra.mxu0 %v548
    %569 = vmatprep.subr.mxu0 0.0
    %570 = vmatpush1.msra.mxu0 %v547
    %571 = vmatprep.subr.mxu0 0.0
    %572 = vmatpush1.msra.mxu0 %v546
    %573 = vmatprep.subr.mxu0 0.0
    %574 = vmatpush1.msra.mxu0 %v545
    %575 = vmatprep.subr.mxu0 0.0
    %576 = vmatpush1.msra.mxu0 %v544
    %577 = vmatprep.subr.mxu0 0.0
    %578 = vmatpush1.msra.mxu0 %v543
    %579 = vmatprep.subr.mxu0 0.0
    %580 = vmatpush1.msra.mxu0 %v542
    %581 = vmatprep.subr.mxu0 0.0
    %582 = vmatpush1.msra.mxu0 %v541
    %583 = vmatprep.subr.mxu0 0.0
    %584 = vmatpush1.msra.mxu0 %v540
    %585 = vmatprep.subr.mxu0 0.0
    %586 = vmatpush1.msra.mxu0 %v539
    %587 = vmatprep.subr.mxu0 0.0
    %588 = vmatpush2.msra.mxu0 0.0
    %589 = vmatprep.subr.mxu0 0.0
    %590 = vmatpush2.msra.mxu0 0.0
    %591 = vmatprep.subr.mxu0 0.0
    %592 = vmatpush2.msra.mxu0 0.0
    %593 = vmatprep.subr.mxu0 0.0
    %594 = vmatpush2.msra.mxu0 0.0
    %595 = vmatprep.subr.mxu0 0.0
    %596 = vmatpush2.msra.mxu0 0.0
    %597 = vmatprep.subr.mxu0 0.0
    %598 = vmatpush2.msra.mxu0 0.0
    %599 = vmatprep.subr.mxu0 0.0
    %600 = vmatpush2.msra.mxu0 0.0
    %601 = vmatprep.subr.mxu0 0.0
    %602 = vmatpush2.msra.mxu0 0.0
    %603 = vmatprep.subr.mxu0 0.0
    %604 = vmatpush2.msra.mxu0 0.0
    %605 = vmatprep.subr.mxu0 0.0
    %606 = vmatpush2.msra.mxu0 0.0
    %607 = vmatprep.subr.mxu0 0.0
    %608 = vmatpush2.msra.mxu0 0.0
    %609 = vmatprep.subr.mxu0 0.0
    %610 = vmatpush2.msra.mxu0 0.0
    %611 = vmatprep.subr.mxu0 0.0
    %612 = vmatpush2.msra.mxu0 0.0
    %613 = vmatprep.subr.mxu0 0.0
    %614 = vmatpush2.msra.mxu0 0.0
    %615 = vmatprep.subr.mxu0 0.0
    %616 = vmatpush2.msra.mxu0 0.0
    %617 = vmatprep.subr.mxu0 0.0
    %618 = vmatpush2.msra.mxu0 0.0
    %619 = vmatprep.mubr.f32.mxu0 0.0
    %620 = vmatmul.mubr.f32.gmra.mxu0 %v538
    %v621 = vpop.f32.mrf.mxu0
    %v622 = vadd.f32 0.0, %v621
    %v623 = vpop.f32.mrf.mxu0
    %624 = vdwg.mxu0
    %v625 = vadd.f32 %v537, %v622
    %v626 = vtanh.pop %v625
    %v627 = vsel %vm62, %v626, %v625
    %628 = vst [vmem:[#allocation2] sm:$0xff] %v627
    %s629 = scalar_lea.vmem [#allocation9], 40
    %630 = vst [vmem:[%s629] sm:$0xff] %v627
    %s631 = scalar_lea.vmem [#allocation3], 48
    %v632 = vld [vmem:[%s631] sm:$0xff]
    %v633 = vld [vmem:[#allocation2] sm:$0xff]
    %v634 = vld [vmem:[#allocation6] sm:$0xff]
    %v635 = vld [vmem:[#allocation6 + $0x8] sm:$0xff]
    %v636 = vld [vmem:[#allocation6 + $0x10] sm:$0xff]
    %v637 = vld [vmem:[#allocation6 + $0x18] sm:$0xff]
    %v638 = vld [vmem:[#allocation6 + $0x20] sm:$0xff]
    %v639 = vld [vmem:[#allocation6 + $0x28] sm:$0xff]
    %v640 = vld [vmem:[#allocation6 + $0x30] sm:$0xff]
    %v641 = vld [vmem:[#allocation6 + $0x38] sm:$0xff]
    %v642 = vld [vmem:[#allocation6 + $0x40] sm:$0xff]
    %v643 = vld [vmem:[#allocation6 + $0x48] sm:$0xff]
    %v644 = vld [vmem:[#allocation6 + $0x50] sm:$0xff]
    %v645 = vld [vmem:[#allocation6 + $0x58] sm:$0xff]
    %v646 = vld [vmem:[#allocation6 + $0x60] sm:$0xff]
    %v647 = vld [vmem:[#allocation6 + $0x68] sm:$0xff]
    %v648 = vld [vmem:[#allocation6 + $0x70] sm:$0xff]
    %v649 = vld [vmem:[#allocation6 + $0x78] sm:$0xff]
    %650 = vmatprep.subr.mxu0 0.0
    %651 = vmatpush1.msra.mxu0 %v649
    %652 = vmatprep.subr.mxu0 0.0
    %653 = vmatpush1.msra.mxu0 %v648
    %654 = vmatprep.subr.mxu0 0.0
    %655 = vmatpush1.msra.mxu0 %v647
    %656 = vmatprep.subr.mxu0 0.0
    %657 = vmatpush1.msra.mxu0 %v646
    %658 = vmatprep.subr.mxu0 0.0
    %659 = vmatpush1.msra.mxu0 %v645
    %660 = vmatprep.subr.mxu0 0.0
    %661 = vmatpush1.msra.mxu0 %v644
    %662 = vmatprep.subr.mxu0 0.0
    %663 = vmatpush1.msra.mxu0 %v643
    %664 = vmatprep.subr.mxu0 0.0
    %665 = vmatpush1.msra.mxu0 %v642
    %666 = vmatprep.subr.mxu0 0.0
    %667 = vmatpush1.msra.mxu0 %v641
    %668 = vmatprep.subr.mxu0 0.0
    %669 = vmatpush1.msra.mxu0 %v640
    %670 = vmatprep.subr.mxu0 0.0
    %671 = vmatpush1.msra.mxu0 %v639
    %672 = vmatprep.subr.mxu0 0.0
    %673 = vmatpush1.msra.mxu0 %v638
    %674 = vmatprep.subr.mxu0 0.0
    %675 = vmatpush1.msra.mxu0 %v637
    %676 = vmatprep.subr.mxu0 0.0
    %677 = vmatpush1.msra.mxu0 %v636
    %678 = vmatprep.subr.mxu0 0.0
    %679 = vmatpush1.msra.mxu0 %v635
    %680 = vmatprep.subr.mxu0 0.0
    %681 = vmatpush1.msra.mxu0 %v634
    %682 = vmatprep.subr.mxu0 0.0
    %683 = vmatpush2.msra.mxu0 0.0
    %684 = vmatprep.subr.mxu0 0.0
    %685 = vmatpush2.msra.mxu0 0.0
    %686 = vmatprep.subr.mxu0 0.0
    %687 = vmatpush2.msra.mxu0 0.0
    %688 = vmatprep.subr.mxu0 0.0
    %689 = vmatpush2.msra.mxu0 0.0
    %690 = vmatprep.subr.mxu0 0.0
    %691 = vmatpush2.msra.mxu0 0.0
    %692 = vmatprep.subr.mxu0 0.0
    %693 = vmatpush2.msra.mxu0 0.0
    %694 = vmatprep.subr.mxu0 0.0
    %695 = vmatpush2.msra.mxu0 0.0
    %696 = vmatprep.subr.mxu0 0.0
    %697 = vmatpush2.msra.mxu0 0.0
    %698 = vmatprep.subr.mxu0 0.0
    %699 = vmatpush2.msra.mxu0 0.0
    %700 = vmatprep.subr.mxu0 0.0
    %701 = vmatpush2.msra.mxu0 0.0
    %702 = vmatprep.subr.mxu0 0.0
    %703 = vmatpush2.msra.mxu0 0.0
    %704 = vmatprep.subr.mxu0 0.0
    %705 = vmatpush2.msra.mxu0 0.0
    %706 = vmatprep.subr.mxu0 0.0
    %707 = vmatpush2.msra.mxu0 0.0
    %708 = vmatprep.subr.mxu0 0.0
    %709 = vmatpush2.msra.mxu0 0.0
    %710 = vmatprep.subr.mxu0 0.0
    %711 = vmatpush2.msra.mxu0 0.0
    %712 = vmatprep.subr.mxu0 0.0
    %713 = vmatpush2.msra.mxu0 0.0
    %714 = vmatprep.mubr.f32.mxu0 0.0
    %715 = vmatmul.mubr.f32.gmra.mxu0 %v633
    %v716 = vpop.f32.mrf.mxu0
    %v717 = vadd.f32 0.0, %v716
    %v718 = vpop.f32.mrf.mxu0
    %719 = vdwg.mxu0
    %v720 = vadd.f32 %v632, %v717
    %v721 = vtanh.pop %v720
    %v722 = vsel %vm62, %v721, %v720
    %723 = vst [vmem:[#allocation2] sm:$0xff] %v722
    %s724 = scalar_lea.vmem [#allocation9], 48
    %725 = vst [vmem:[%s724] sm:$0xff] %v722
    %s726 = scalar_lea.vmem [#allocation3], 56
    %v727 = vld [vmem:[%s726] sm:$0xff]
    %v728 = vld [vmem:[#allocation2] sm:$0xff]
    %v729 = vld [vmem:[#allocation6] sm:$0xff]
    %v730 = vld [vmem:[#allocation6 + $0x8] sm:$0xff]
    %v731 = vld [vmem:[#allocation6 + $0x10] sm:$0xff]
    %v732 = vld [vmem:[#allocation6 + $0x18] sm:$0xff]
    %v733 = vld [vmem:[#allocation6 + $0x20] sm:$0xff]
    %v734 = vld [vmem:[#allocation6 + $0x28] sm:$0xff]
    %v735 = vld [vmem:[#allocation6 + $0x30] sm:$0xff]
    %v736 = vld [vmem:[#allocation6 + $0x38] sm:$0xff]
    %v737 = vld [vmem:[#allocation6 + $0x40] sm:$0xff]
    %v738 = vld [vmem:[#allocation6 + $0x48] sm:$0xff]
    %v739 = vld [vmem:[#allocation6 + $0x50] sm:$0xff]
    %v740 = vld [vmem:[#allocation6 + $0x58] sm:$0xff]
    %v741 = vld [vmem:[#allocation6 + $0x60] sm:$0xff]
    %v742 = vld [vmem:[#allocation6 + $0x68] sm:$0xff]
    %v743 = vld [vmem:[#allocation6 + $0x70] sm:$0xff]
    %v744 = vld [vmem:[#allocation6 + $0x78] sm:$0xff]
    %745 = vmatprep.subr.mxu0 0.0
    %746 = vmatpush1.msra.mxu0 %v744
    %747 = vmatprep.subr.mxu0 0.0
    %748 = vmatpush1.msra.mxu0 %v743
    %749 = vmatprep.subr.mxu0 0.0
    %750 = vmatpush1.msra.mxu0 %v742
    %751 = vmatprep.subr.mxu0 0.0
    %752 = vmatpush1.msra.mxu0 %v741
    %753 = vmatprep.subr.mxu0 0.0
    %754 = vmatpush1.msra.mxu0 %v740
    %755 = vmatprep.subr.mxu0 0.0
    %756 = vmatpush1.msra.mxu0 %v739
    %757 = vmatprep.subr.mxu0 0.0
    %758 = vmatpush1.msra.mxu0 %v738
    %759 = vmatprep.subr.mxu0 0.0
    %760 = vmatpush1.msra.mxu0 %v737
    %761 = vmatprep.subr.mxu0 0.0
    %762 = vmatpush1.msra.mxu0 %v736
    %763 = vmatprep.subr.mxu0 0.0
    %764 = vmatpush1.msra.mxu0 %v735
    %765 = vmatprep.subr.mxu0 0.0
    %766 = vmatpush1.msra.mxu0 %v734
    %767 = vmatprep.subr.mxu0 0.0
    %768 = vmatpush1.msra.mxu0 %v733
    %769 = vmatprep.subr.mxu0 0.0
    %770 = vmatpush1.msra.mxu0 %v732
    %771 = vmatprep.subr.mxu0 0.0
    %772 = vmatpush1.msra.mxu0 %v731
    %773 = vmatprep.subr.mxu0 0.0
    %774 = vmatpush1.msra.mxu0 %v730
    %775 = vmatprep.subr.mxu0 0.0
    %776 = vmatpush1.msra.mxu0 %v729
    %777 = vmatprep.subr.mxu0 0.0
    %778 = vmatpush2.msra.mxu0 0.0
    %779 = vmatprep.subr.mxu0 0.0
    %780 = vmatpush2.msra.mxu0 0.0
    %781 = vmatprep.subr.mxu0 0.0
    %782 = vmatpush2.msra.mxu0 0.0
    %783 = vmatprep.subr.mxu0 0.0
    %784 = vmatpush2.msra.mxu0 0.0
    %785 = vmatprep.subr.mxu0 0.0
    %786 = vmatpush2.msra.mxu0 0.0
    %787 = vmatprep.subr.mxu0 0.0
    %788 = vmatpush2.msra.mxu0 0.0
    %789 = vmatprep.subr.mxu0 0.0
    %790 = vmatpush2.msra.mxu0 0.0
    %791 = vmatprep.subr.mxu0 0.0
    %792 = vmatpush2.msra.mxu0 0.0
    %793 = vmatprep.subr.mxu0 0.0
    %794 = vmatpush2.msra.mxu0 0.0
    %795 = vmatprep.subr.mxu0 0.0
    %796 = vmatpush2.msra.mxu0 0.0
    %797 = vmatprep.subr.mxu0 0.0
    %798 = vmatpush2.msra.mxu0 0.0
    %799 = vmatprep.subr.mxu0 0.0
    %800 = vmatpush2.msra.mxu0 0.0
    %801 = vmatprep.subr.mxu0 0.0
    %802 = vmatpush2.msra.mxu0 0.0
    %803 = vmatprep.subr.mxu0 0.0
    %804 = vmatpush2.msra.mxu0 0.0
    %805 = vmatprep.subr.mxu0 0.0
    %806 = vmatpush2.msra.mxu0 0.0
    %807 = vmatprep.subr.mxu0 0.0
    %808 = vmatpush2.msra.mxu0 0.0
    %809 = vmatprep.mubr.f32.mxu0 0.0
    %810 = vmatmul.mubr.f32.gmra.mxu0 %v728
    %v811 = vpop.f32.mrf.mxu0
    %v812 = vadd.f32 0.0, %v811
    %v813 = vpop.f32.mrf.mxu0
    %814 = vdwg.mxu0
    %v815 = vadd.f32 %v727, %v812
    %v816 = vtanh.pop %v815
    %v817 = vsel %vm62, %v816, %v815
    %818 = vst [vmem:[#allocation2] sm:$0xff] %v817
    %s819 = scalar_lea.vmem [#allocation9], 56
    %820 = vst [vmem:[%s819] sm:$0xff] %v817
    // Predicated region
    $region30: #{tpu_custom_call.1} parent=1 // pred_check
      _
    $region31: #{tpu_custom_call.1} parent=1 // pred_check_branch
      %822 = sbr.rel (0) target = $region33
    $region32: #{tpu_custom_call.1} parent=1 // pred_region
      %s824 = ssub.s32 1024, 1024
      %825 = vsyncadd [#allocation5], %s824
      %s826 = sshll.u32 [#allocation9], 4
      %s827 = int_to_ptr.vmem [resolvable:$true] %s826
      %832 = dma.vmem_to_hbm [thread:$0]  %s827, 1024, %s3, [#allocation5], 128, 128, 8
    $region33: #{tpu_custom_call.1} parent=1 // pred_fallthru
      _
    // Predicated region
    $region34: #{tpu_custom_call.1} parent=1 // pred_check
      _
    $region35: #{tpu_custom_call.1} parent=1 // pred_check_branch
      %834 = sbr.rel (0) target = $region37
    $region36: #{tpu_custom_call.1} parent=1 // pred_region
      %835 = dma.done [#allocation5], 1024
    $region37: #{tpu_custom_call.1} parent=1 // pred_fallthru
      _
    %836 = vsyncpa [#allocation4], 1
    %837 = vsyncpa [#allocation7], 1
    %838 = vsyncpa [#allocation5], 1

</llo_original>
